<compile_context>
chip_gen: v7x
topology: tpu7x:2x2x1
jax: 0.10.0
libtpu: 0.0.40
codegen_flags: <defaults>
</compile_context>

<pallas_src>
import functools
import math

import jax
import jax.numpy as jnp
from jax.experimental import pallas as pl
from jax.experimental.pallas import tpu as pltpu


# ----------------------------- Pallas kernels --------------------------------
def _layer_norm_to_bf16(x_any, gamma, beta, *, eps, d_true):
    """Two-pass LayerNorm in f32, result cast to bf16 for the MXU LHS."""
    x = x_any.astype(jnp.float32)
    d_pad = x.shape[-1]
    inv_d = 1.0 / d_true
    mean = jnp.sum(x, axis=-1, keepdims=True) * inv_d
    c = x - mean
    if d_true != d_pad:
        # Feature dim was zero-padded to a multiple of 128; mask the padded
        # columns out of the variance (mean already correct: pads are zero).
        mask = jax.lax.broadcasted_iota(jnp.int32, x.shape, x.ndim - 1) < d_true
        c = jnp.where(mask, c, 0.0)
    var = jnp.sum(c * c, axis=-1, keepdims=True) * inv_d
    xn = c * jax.lax.rsqrt(var + eps)
    return (xn * gamma + beta).astype(jnp.bfloat16)


def _ln_matmul_cached_kernel(x_ref, g_ref, b_ref, w_ref, bo_ref, out_ref,
                             xn_ref, *, eps, d_true):
    """LN computed once per row tile (j == 0), cached in bf16 scratch.

    x_ref  : (TM, Dp)  bf16  emb*sqrt(D) + positional encoding
    g_ref  : (1, Dp)   f32   after_norm gamma (zero-padded)
    b_ref  : (1, Dp)   f32   after_norm beta  (zero-padded)
    w_ref  : (Dp, TN)  bf16  output_layer weight slab
    bo_ref : (1, TN)   f32   output_layer bias slab
    out_ref: (TM, TN)         logits tile
    xn_ref : (TM, Dp)  bf16  VMEM scratch reused across vocab tiles
    """
    @pl.when(pl.program_id(1) == 0)
    def _():
        xn_ref[...] = _layer_norm_to_bf16(x_ref[...], g_ref[...], b_ref[...],
                                          eps=eps, d_true=d_true)

    out_ref[...] = (
        jnp.dot(xn_ref[...], w_ref[...], preferred_element_type=jnp.float32)
        + bo_ref[...]
    ).astype(out_ref.dtype)


def _ln_matmul_recompute_kernel(x_ref, g_ref, b_ref, w_ref, bo_ref, out_ref,
                                *, eps, d_true):
    """LN recomputed every step: no scratch dependency, so both grid axes can
    be 'parallel' (keeps both v7x TensorCores busy when there is only one
    row tile)."""
    xn = _layer_norm_to_bf16(x_ref[...], g_ref[...], b_ref[...],
                             eps=eps, d_true=d_true)
    out_ref[...] = (
        jnp.dot(xn, w_ref[...], preferred_element_type=jnp.float32)
        + bo_ref[...]
    ).astype(out_ref.dtype)


# ------------------------------ helpers (glue) -------------------------------
def _round_up(x, m):
    return ((x + m - 1) // m) * m


def _cdiv(a, b):
    return -(-a // b)


def _vmem_footprint(tm, tn, d_pad, logits_dtype, w_buffers):
    """Approximate double-buffered VMEM bytes for one grid step."""
    out_bytes = jnp.dtype(logits_dtype).itemsize
    wbuf = 2 if w_buffers is None else max(2, int(w_buffers))
    return (2 * tm * d_pad * 2            # x (bf16), double-buffered
            + wbuf * d_pad * tn * 2       # w slab (bf16)
            + 2 * tm * tn * out_bytes     # logits tile
            + 2 * 8 * tn * 4              # bias slab (sublane-padded)
            + 2 * 2 * 8 * d_pad * 4       # gamma / beta
            + tm * d_pad * 2)             # xn scratch (bf16)


def _sinusoidal_positional_encoding(length, d_model, dtype=jnp.float32):
    pos = jnp.arange(length, dtype=jnp.float32)[:, None]            # (L, 1)
    i = jnp.arange(0, d_model, 2, dtype=jnp.float32)[None, :]       # (1, D/2)
    div = jnp.exp(-(jnp.log(10000.0) / d_model) * i)
    pe_sin = jnp.sin(pos * div)                                      # (L, D/2)
    pe_cos = jnp.cos(pos * div)                                      # (L, D/2)
    pe = jnp.stack([pe_sin, pe_cos], axis=-1).reshape(length, d_model)
    return pe.astype(dtype)


def init_params(key, vocab_size, attention_dim):
    k_emb, k_w, k_b = jax.random.split(key, 3)
    scale = 1.0 / math.sqrt(attention_dim)
    return {
        # torch.nn.Embedding(vocab_size, attention_dim)
        "embed": jax.random.normal(k_emb, (vocab_size, attention_dim),
                                   jnp.float32) * scale,
        # after_norm = LayerNorm(attention_dim), eps=1e-12 (espnet)
        "ln_gamma": jnp.ones((1, attention_dim), jnp.float32),
        "ln_beta": jnp.zeros((1, attention_dim), jnp.float32),
        # output_layer = Linear(attention_dim, vocab_size); stored (D, V), bf16
        "w_out": (jax.random.normal(k_w, (attention_dim, vocab_size),
                                    jnp.float32) * scale).astype(jnp.bfloat16),
        "b_out": jax.random.normal(k_b, (1, vocab_size), jnp.float32) * 0.01,
    }


# ------------------------------- forward -------------------------------------
def base_transformer_decoder_forward(params, hs_pad, hlens, ys_in_pad,
                                     ys_in_lens, *, tm=1024, tn=1024,
                                     logits_dtype=jnp.float32,
                                     w_buffers=None,
                                     vmem_budget_bytes=44 << 20):
    """Mirrors BaseTransformerDecoder.forward (decoders == None => identity).

    hs_pad    : (B, T_in, D) float32 encoder memory (unused: no decoder blocks)
    hlens     : (B,)   int32
    ys_in_pad : (B, L)  int32 token ids
    ys_in_lens: (B,)   int32
    returns (logits (B, L, V), olens (B, L) int32 == tgt_mask.sum(1))
    """
    del hs_pad, hlens  # memory / memory_mask unused: base class has no blocks
    B, L = ys_in_pad.shape
    D = params["embed"].shape[1]
    V = params["w_out"].shape[1]

    # olens = tgt_mask.sum(1) in closed form:
    #   tgt_mask[b,i,j] = (j < ys_in_lens[b]) & (j <= i)
    #   => olens[b,j] = (L - j) * (j < ys_in_lens[b])
    j_idx = jnp.arange(L, dtype=jnp.int32)
    olens = jnp.where(j_idx[None, :] < ys_in_lens.astype(jnp.int32)[:, None],
                      (L - j_idx)[None, :], 0).astype(jnp.int32)

    # embedding gather + xscale + positional encoding (XLA glue, fuses);
    # streamed into the kernel as bf16 (LN statistics stay f32 in-kernel).
    pe = _sinusoidal_positional_encoding(L, D)                       # (L, D)
    x = jnp.take(params["embed"], ys_in_pad, axis=0) * math.sqrt(D)  # (B, L, D)
    x = (x + pe[None]).reshape(B * L, D).astype(jnp.bfloat16)

    rows = B * L
    d_pad = _round_up(D, 128)

    # --- tile-size selection ---------------------------------------------
    # TM: multiple of 16 (bf16 sublane pack); balanced so the final row tile
    # is not mostly padding.
    tm_eff = min(max(tm, 16), _round_up(rows, 16))
    tm_eff = _round_up(tm_eff, 16)
    n_rt = _cdiv(rows, tm_eff)
    tm_eff = min(tm_eff, _round_up(_cdiv(rows, n_rt), 16))
    # TN: multiple of 128 (lane-dense output stores).
    tn_eff = min(max(tn, 128), _round_up(V, 128))
    tn_eff = _round_up(tn_eff, 128)

    # Shrink tiles until the double-buffered footprint fits the VMEM budget
    # (v7x has only 64 MiB physical VMEM; v5e/v6e have 128 MiB).
    while _vmem_footprint(tm_eff, tn_eff, d_pad, logits_dtype,
                          w_buffers) > vmem_budget_bytes:
        if tn_eff > 256:
            tn_eff = max(256, _round_up(tn_eff // 2, 128))
        elif tm_eff > 64:
            tm_eff = max(64, _round_up(tm_eff // 2, 16))
        else:
            break

    rows_pad = _round_up(rows, tm_eff)
    v_pad = _round_up(V, tn_eff)
    num_row_tiles = rows_pad // tm_eff
    num_v_tiles = v_pad // tn_eff

    # --- operand padding ---------------------------------------------------
    if rows_pad != rows or d_pad != D:
        x = jnp.pad(x, ((0, rows_pad - rows), (0, d_pad - D)))
    w = params["w_out"].astype(jnp.bfloat16)
    bo = params["b_out"].astype(jnp.float32)
    if v_pad != V or d_pad != D:
        w = jnp.pad(w, ((0, d_pad - D), (0, v_pad - V)))
        bo = jnp.pad(bo, ((0, 0), (0, v_pad - V)))
    gamma = params["ln_gamma"].astype(jnp.float32).reshape(1, D)
    beta = params["ln_beta"].astype(jnp.float32).reshape(1, D)
    if d_pad != D:
        gamma = jnp.pad(gamma, ((0, 0), (0, d_pad - D)))
        beta = jnp.pad(beta, ((0, 0), (0, d_pad - D)))

    # --- kernel / pipelining variant ---------------------------------------
    # With >= 2 row tiles the LN result is cached in scratch at j == 0 and the
    # vocab axis must stay sequential.  With a single row tile (small batch)
    # recompute LN each step so BOTH axes can be parallel (v7x 2-TC coverage).
    recompute_ln = num_row_tiles < 2
    if recompute_ln:
        kernel = functools.partial(_ln_matmul_recompute_kernel,
                                   eps=1e-12, d_true=D)
        scratch_shapes = []
        dim_sem = ("parallel", "parallel")
    else:
        kernel = functools.partial(_ln_matmul_cached_kernel,
                                   eps=1e-12, d_true=D)
        scratch_shapes = [pltpu.VMEM((tm_eff, d_pad), jnp.bfloat16)]
        dim_sem = ("parallel", "arbitrary")

    w_spec_kwargs = {}
    if w_buffers is not None:
        # Insurance against exposed weight-slab DMA at tile transitions.
        w_spec_kwargs["pipeline_mode"] = pl.Buffered(int(w_buffers))

    footprint = _vmem_footprint(tm_eff, tn_eff, d_pad, logits_dtype, w_buffers)
    vmem_limit = int(min(56 << 20, max(32 << 20, footprint + (8 << 20))))

    grid = (num_row_tiles, num_v_tiles)

    out = pl.pallas_call(
        kernel,
        out_shape=jax.ShapeDtypeStruct((rows_pad, v_pad), logits_dtype),
        grid_spec=pltpu.PrefetchScalarGridSpec(
            num_scalar_prefetch=0,
            grid=grid,
            in_specs=[
                pl.BlockSpec((tm_eff, d_pad), lambda i, j: (i, 0)),   # x rows
                pl.BlockSpec((1, d_pad), lambda i, j: (0, 0)),        # gamma
                pl.BlockSpec((1, d_pad), lambda i, j: (0, 0)),        # beta
                pl.BlockSpec((d_pad, tn_eff), lambda i, j: (0, j),
                             **w_spec_kwargs),                        # w slab
                pl.BlockSpec((1, tn_eff), lambda i, j: (0, j)),       # b slab
            ],
            out_specs=pl.BlockSpec((tm_eff, tn_eff), lambda i, j: (i, j)),
            scratch_shapes=scratch_shapes,
        ),
        compiler_params=pltpu.CompilerParams(
            dimension_semantics=dim_sem,
            vmem_limit_bytes=vmem_limit),
    )(x, gamma, beta, w, bo)

    logits = out[:rows, :V].reshape(B, L, V)
    return logits, olens


# -------------------------------- main ----------------------------------------
if __name__ == "__main__":
    # Small shapes consistent with the module:
    B, T_in, L = 2, 16, 16
    D = 128          # encoder_output_size / attention_dim
    V = 256          # vocab_size

    key = jax.random.PRNGKey(0)
    k_p, k_h, k_y = jax.random.split(key, 3)

    params = init_params(k_p, vocab_size=V, attention_dim=D)

    hs_pad = jax.random.normal(k_h, (B, T_in, D), jnp.float32)
    hlens = jnp.array([T_in, 10], dtype=jnp.int32)
    ys_in_pad = jax.random.randint(k_y, (B, L), 0, V, dtype=jnp.int32)
    ys_in_lens = jnp.array([L, 5], dtype=jnp.int32)

    # Call 1: default (large) tiles -> single row tile -> recompute-LN path,
    #         both grid axes parallel, f32 logits (matches torch semantics).
    fwd_default = jax.jit(functools.partial(base_transformer_decoder_forward))
    logits, olens = fwd_default(params, hs_pad, hlens, ys_in_pad, ys_in_lens)
    jax.block_until_ready((logits, olens))

    # Call 2: small tiles -> multiple row & vocab tiles -> cached-LN path with
    #         scratch reuse over vocab tiles, bf16 logits writeback.
    fwd_tiled = jax.jit(functools.partial(base_transformer_decoder_forward,
                                          tm=16, tn=128,
                                          logits_dtype=jnp.bfloat16))
    logits2, olens2 = fwd_tiled(params, hs_pad, hlens, ys_in_pad, ys_in_lens)
    jax.block_until_ready((logits2, olens2))

    # ---- reference check (pure JAX, mirroring the bf16 kernel path) ----
    pe = _sinusoidal_positional_encoding(L, D)
    x_f = jnp.take(params["embed"], ys_in_pad, axis=0) * math.sqrt(D) + pe[None]
    x_b = x_f.astype(jnp.bfloat16).astype(jnp.float32)
    mu = jnp.mean(x_b, -1, keepdims=True)
    var = jnp.mean((x_b - mu) ** 2, -1, keepdims=True)
    xn = (x_b - mu) * jax.lax.rsqrt(var + 1e-12)
    xn = xn * params["ln_gamma"][0] + params["ln_beta"][0]
    ref = jnp.dot(xn.astype(jnp.bfloat16).reshape(-1, D), params["w_out"],
                  preferred_element_type=jnp.float32).reshape(B, L, V)
    ref = ref + params["b_out"][0]

    assert logits.shape == (B, L, V)
    assert logits2.shape == (B, L, V)
    assert jnp.allclose(logits, ref, atol=5e-2, rtol=5e-2), "logits mismatch"
    assert jnp.allclose(logits2.astype(jnp.float32), ref,
                        atol=5e-2, rtol=5e-2), "bf16 logits mismatch"

    # olens reference: the materialized-mask formula from the torch code
    tgt_pad_mask = jnp.arange(L)[None, :] < ys_in_lens[:, None]
    tgt_mask = tgt_pad_mask[:, None, :] & jnp.tril(jnp.ones((L, L), bool))[None]
    olens_ref = jnp.sum(tgt_mask.astype(jnp.int32), axis=1)
    assert jnp.array_equal(olens, olens_ref), "olens mismatch"
    assert jnp.array_equal(olens2, olens_ref), "olens mismatch (tiled)"

    print("KERNEL_OK")
</pallas_src>

<mosaic_0001>
module attributes {stable_mosaic.version = 11 : i64} {
  func.func @_ln_matmul_recompute_kernel(%arg0: i32, %arg1: i32, %arg2: memref<32x128xbf16, #tpu.memory_space<vmem>>, %arg3: memref<1x128xf32, #tpu.memory_space<vmem>>, %arg4: memref<1x128xf32, #tpu.memory_space<vmem>>, %arg5: memref<128x256xbf16, #tpu.memory_space<vmem>>, %arg6: memref<1x256xf32, #tpu.memory_space<vmem>>, %arg7: memref<32x256xf32, #tpu.memory_space<vmem>>) attributes {dimension_semantics = [#tpu.dimension_semantics<parallel>, #tpu.dimension_semantics<parallel>], iteration_bounds = array<i64: 1, 1>, scalar_prefetch = 0 : i64, scratch_operands = 0 : i64, tpu.core_type = #tpu.core_type<tc>, window_params = [{transform_indices = @transform_0, window_bounds = array<i64: 32, 128>}, {pipeline_mode = #tpu.pipeline_mode<synchronous>, transform_indices = @transform_1, window_bounds = array<i64: 1, 128>}, {pipeline_mode = #tpu.pipeline_mode<synchronous>, transform_indices = @transform_2, window_bounds = array<i64: 1, 128>}, {transform_indices = @transform_3, window_bounds = array<i64: 128, 256>}, {transform_indices = @transform_4, window_bounds = array<i64: 1, 256>}, {transform_indices = @transform_5, window_bounds = array<i64: 32, 256>}]} {
    %c0 = arith.constant 0 : index
    %c0_0 = arith.constant 0 : index
    %0 = vector.load %arg2[%c0, %c0_0] : memref<32x128xbf16, #tpu.memory_space<vmem>>, vector<32x128xbf16>
    %c0_1 = arith.constant 0 : index
    %c0_2 = arith.constant 0 : index
    %1 = vector.load %arg3[%c0_1, %c0_2] : memref<1x128xf32, #tpu.memory_space<vmem>>, vector<1x128xf32>
    %c0_3 = arith.constant 0 : index
    %c0_4 = arith.constant 0 : index
    %2 = vector.load %arg4[%c0_3, %c0_4] : memref<1x128xf32, #tpu.memory_space<vmem>>, vector<1x128xf32>
    %3 = arith.extf %0 : vector<32x128xbf16> to vector<32x128xf32>
    %cst = arith.constant dense<0.000000e+00> : vector<32xf32>
    %4 = vector.multi_reduction <add>, %3, %cst [1] : vector<32x128xf32> to vector<32xf32>
    %5 = vector.shape_cast %4 : vector<32xf32> to vector<32x1xf32>
    %cst_5 = arith.constant 7.812500e-03 : f32
    %6 = vector.broadcast %cst_5 : f32 to vector<32x1xf32>
    %7 = arith.mulf %5, %6 : vector<32x1xf32>
    %8 = vector.broadcast %7 : vector<32x1xf32> to vector<32x128xf32>
    %9 = arith.subf %3, %8 : vector<32x128xf32>
    %10 = arith.mulf %9, %9 : vector<32x128xf32>
    %cst_6 = arith.constant dense<0.000000e+00> : vector<32xf32>
    %11 = vector.multi_reduction <add>, %10, %cst_6 [1] : vector<32x128xf32> to vector<32xf32>
    %12 = vector.shape_cast %11 : vector<32xf32> to vector<32x1xf32>
    %cst_7 = arith.constant 7.812500e-03 : f32
    %13 = vector.broadcast %cst_7 : f32 to vector<32x1xf32>
    %14 = arith.mulf %12, %13 : vector<32x1xf32>
    %cst_8 = arith.constant 9.99999996E-13 : f32
    %15 = vector.broadcast %cst_8 : f32 to vector<32x1xf32>
    %16 = arith.addf %14, %15 : vector<32x1xf32>
    %17 = math.rsqrt %16 : vector<32x1xf32>
    %18 = vector.broadcast %17 : vector<32x1xf32> to vector<32x128xf32>
    %19 = arith.mulf %9, %18 : vector<32x128xf32>
    %20 = vector.broadcast %1 : vector<1x128xf32> to vector<32x128xf32>
    %21 = arith.mulf %19, %20 : vector<32x128xf32>
    %22 = vector.broadcast %2 : vector<1x128xf32> to vector<32x128xf32>
    %23 = arith.addf %21, %22 : vector<32x128xf32>
    %24 = arith.truncf %23 : vector<32x128xf32> to vector<32x128xbf16>
    %c0_9 = arith.constant 0 : index
    %c0_10 = arith.constant 0 : index
    %25 = vector.load %arg5[%c0_9, %c0_10] : memref<128x256xbf16, #tpu.memory_space<vmem>>, vector<128x256xbf16>
    %cst_11 = arith.constant dense<0.000000e+00> : vector<32x256xf32>
    %26 = tpu.matmul %24, %25, %cst_11 {dimension_numbers = #tpu.dot_dimension_numbers<[1], [0], [0], [1], [0, 0, 1, 1], [], []>} : vector<32x128xbf16>, vector<128x256xbf16>, vector<32x256xf32> -> vector<32x256xf32>
    %c0_12 = arith.constant 0 : index
    %c0_13 = arith.constant 0 : index
    %27 = vector.load %arg6[%c0_12, %c0_13] : memref<1x256xf32, #tpu.memory_space<vmem>>, vector<1x256xf32>
    %28 = vector.broadcast %27 : vector<1x256xf32> to vector<32x256xf32>
    %29 = arith.addf %26, %28 : vector<32x256xf32>
    %c0_14 = arith.constant 0 : index
    %c0_15 = arith.constant 0 : index
    %30 = vector.load %arg7[%c0_14, %c0_15] : memref<32x256xf32, #tpu.memory_space<vmem>>, vector<32x256xf32>
    tpu.vector_store %arg7[%c0_14, %c0_15], %29 {strides = array<i32>} : memref<32x256xf32, #tpu.memory_space<vmem>>, vector<32x256xf32>,
    return
  }
  func.func @transform_0(%arg0: i32, %arg1: i32) -> (i32, i32) {
    %c0_i32 = arith.constant 0 : i32
    %c0_i32_0 = arith.constant 0 : i32
    return %arg0, %c0_i32 : i32, i32
  }
  func.func @transform_1(%arg0: i32, %arg1: i32) -> (i32, i32) {
    %c0_i32 = arith.constant 0 : i32
    %c0_i32_0 = arith.constant 0 : i32
    %c0_i32_1 = arith.constant 0 : i32
    return %c0_i32, %c0_i32_0 : i32, i32
  }
  func.func @transform_2(%arg0: i32, %arg1: i32) -> (i32, i32) {
    %c0_i32 = arith.constant 0 : i32
    %c0_i32_0 = arith.constant 0 : i32
    %c0_i32_1 = arith.constant 0 : i32
    return %c0_i32, %c0_i32_0 : i32, i32
  }
  func.func @transform_3(%arg0: i32, %arg1: i32) -> (i32, i32) {
    %c0_i32 = arith.constant 0 : i32
    %c0_i32_0 = arith.constant 0 : i32
    return %c0_i32, %arg1 : i32, i32
  }
  func.func @transform_4(%arg0: i32, %arg1: i32) -> (i32, i32) {
    %c0_i32 = arith.constant 0 : i32
    %c0_i32_0 = arith.constant 0 : i32
    return %c0_i32, %arg1 : i32, i32
  }
  func.func @transform_5(%arg0: i32, %arg1: i32) -> (i32, i32) {
    %c0_i32 = arith.constant 0 : i32
    return %arg0, %arg1 : i32, i32
  }
}

</mosaic_0001>

<llo_original>
// kernel: base_transformer_decoder_forward.1
$region0: #{base_transformer_decoder_forward.1}
  #allocation0 [shape = 'u32[]', space=smem, size = 0x4, offset = 0x4, fixed_abs, tag = 'smem constant byte address 0x4 - core index']
  #allocation1 [shape = 'u32[144,128]{1,0:T(1,128)}', space=vmem, size = 0x12000, scoped, tag = 'internal scratch']
  %s0 = inlined_call_operand.vmem [shape: bf16[32,128], index: 0, kind: input, shape index: {}]
  %s1 = inlined_call_operand.vmem [shape: f32[1,128], index: 1, kind: input, shape index: {}]
  %s2 = inlined_call_operand.vmem [shape: f32[1,128], index: 2, kind: input, shape index: {}]
  %s3 = inlined_call_operand.vmem [shape: bf16[128,256], index: 3, kind: input, shape index: {}]
  %s4 = inlined_call_operand.vmem [shape: f32[1,256], index: 4, kind: input, shape index: {}]
  %s5 = inlined_call_operand.hbm [shape: f32[32,256], index: 5, kind: output, shape index: {}]
  %s6 = sld [smem:[#allocation0]]
  $region30: #{base_transformer_decoder_forward.1} parent=0
    _
  %s8 = ssub.s32 1, %s6
  %s9 = scalar_select 0, %s8, %s6
  $region1: #{base_transformer_decoder_forward.1} parent=0
    #allocation2 [shape = 'u8[32768]{0}', space=vmem, size = 0x8000, scoped, tag = 'output window, operand 0, single buffered']
    #allocation3 [shape = 's32[1]{0}', space=sflag, size = 0x4, scoped, tag = 'scoped memory for base_transformer_decoder_forward.1']
    %10 = vsyncpa [#allocation3], 0
    // Predicated region
    $region2: #{base_transformer_decoder_forward.1} parent=1 // pred_check
      _
    $region3: #{base_transformer_decoder_forward.1} parent=1 // pred_check_branch
      %12 = sbr.rel (0) target = $region5
    $region4: #{base_transformer_decoder_forward.1} parent=1 // pred_region
      _
    $region5: #{base_transformer_decoder_forward.1} parent=1 // pred_fallthru
      _
    // Predicated region
    $region6: #{base_transformer_decoder_forward.1} parent=1 // pred_check
      _
    $region7: #{base_transformer_decoder_forward.1} parent=1 // pred_check_branch
      %14 = sbr.rel (0) target = $region9
    $region8: #{base_transformer_decoder_forward.1} parent=1 // pred_region
      _
    $region9: #{base_transformer_decoder_forward.1} parent=1 // pred_fallthru
      _
    // Predicated region
    $region10: #{base_transformer_decoder_forward.1} parent=1 // pred_check
      _
    $region11: #{base_transformer_decoder_forward.1} parent=1 // pred_check_branch
      %16 = sbr.rel (0) target = $region13
    $region12: #{base_transformer_decoder_forward.1} parent=1 // pred_region
      _
    $region13: #{base_transformer_decoder_forward.1} parent=1 // pred_fallthru
      _
    // Predicated region
    $region14: #{base_transformer_decoder_forward.1} parent=1 // pred_check
      _
    $region15: #{base_transformer_decoder_forward.1} parent=1 // pred_check_branch
      %18 = sbr.rel (0) target = $region17
    $region16: #{base_transformer_decoder_forward.1} parent=1 // pred_region
      _
    $region17: #{base_transformer_decoder_forward.1} parent=1 // pred_fallthru
      _
    // Predicated region
    $region18: #{base_transformer_decoder_forward.1} parent=1 // pred_check
      _
    $region19: #{base_transformer_decoder_forward.1} parent=1 // pred_check_branch
      %20 = sbr.rel (0) target = $region21
    $region20: #{base_transformer_decoder_forward.1} parent=1 // pred_region
      _
    $region21: #{base_transformer_decoder_forward.1} parent=1 // pred_fallthru
      _
    %v22 = vld [vmem:[%s0] sm:$0xf]
    %v23 = vld [vmem:[%s0 + $0x4] sm:$0xf]
    %v24 = vld [vmem:[%s0 + $0x8] sm:$0xf]
    %v25 = vld [vmem:[%s0 + $0xc] sm:$0xf]
    %v26 = vld [vmem:[%s1] sm:$0x1]
    %v27 = vld [vmem:[%s2] sm:$0x1]
    %v28 = vunpack.c.l.bf16 %v22
    %v29 = vunpack.c.l.bf16 %v23
    %v30 = vunpack.c.l.bf16 %v24
    %v31 = vunpack.c.l.bf16 %v25
    %32 = vadd.xlane.f32.xlu0 %v28
    %v33 = vpop.xlane.xlu0 %32
    %34 = vadd.xlane.f32.xlu0 %v29
    %v35 = vpop.xlane.xlu0 %34
    %36 = vadd.xlane.f32.xlu0 %v30
    %v37 = vpop.xlane.xlu0 %36
    %38 = vadd.xlane.f32.xlu0 %v31
    %v39 = vpop.xlane.xlu0 %38
    %v40 = vmul.f32 %v33, 0.0078125
    %v41 = vmul.f32 %v35, 0.0078125
    %v42 = vmul.f32 %v37, 0.0078125
    %v43 = vmul.f32 %v39, 0.0078125
    %v44 = vsub.f32 %v28, %v40
    %v45 = vsub.f32 %v29, %v41
    %v46 = vsub.f32 %v30, %v42
    %v47 = vsub.f32 %v31, %v43
    %v48 = vmul.f32 %v44, %v44
    %v49 = vmul.f32 %v45, %v45
    %v50 = vmul.f32 %v46, %v46
    %v51 = vmul.f32 %v47, %v47
    %52 = vadd.xlane.f32.xlu0 %v48
    %v53 = vpop.xlane.xlu0 %52
    %54 = vadd.xlane.f32.xlu0 %v49
    %v55 = vpop.xlane.xlu0 %54
    %56 = vadd.xlane.f32.xlu0 %v50
    %v57 = vpop.xlane.xlu0 %56
    %58 = vadd.xlane.f32.xlu0 %v51
    %v59 = vpop.xlane.xlu0 %58
    %v60 = vmul.f32 %v53, 0.0078125
    %v61 = vmul.f32 %v55, 0.0078125
    %v62 = vmul.f32 %v57, 0.0078125
    %v63 = vmul.f32 %v59, 0.0078125
    %v64 = vadd.f32 %v60, 1e-12
    %v65 = vadd.f32 %v61, 1e-12
    %v66 = vadd.f32 %v62, 1e-12
    %v67 = vadd.f32 %v63, 1e-12
    %v68 = vrsqrt.pop %v64
    %v69 = vrsqrt.pop %v65
    %v70 = vrsqrt.pop %v66
    %v71 = vrsqrt.pop %v67
    %v72 = vmul.f32 %v44, %v68
    %v73 = vmul.f32 %v45, %v69
    %v74 = vmul.f32 %v46, %v70
    %v75 = vmul.f32 %v47, %v71
    %v77 = vlaneseq
    %v78 = vshrl.u32 %v77, 7
    %v79 = vsub.s32 0, %v78
    %v80 = vrot.slane %v26, %v79
    %v82 = vmul.f32 %v72, %v80
    %v83 = vmul.f32 %v73, %v80
    %v84 = vmul.f32 %v74, %v80
    %v85 = vmul.f32 %v75, %v80
    %v87 = vlaneseq
    %v88 = vshrl.u32 %v87, 7
    %v89 = vsub.s32 0, %v88
    %v90 = vrot.slane %v27, %v89
    %v92 = vadd.f32 %v82, %v90
    %v93 = vadd.f32 %v83, %v90
    %v94 = vadd.f32 %v84, %v90
    %v95 = vadd.f32 %v85, %v90
    %v96 = vpack.c.bf16 %v93, %v92
    %v97 = vpack.c.bf16 %v95, %v94
    %v98 = vld [vmem:[%s3] sm:$0xff]
    %v99 = vld [vmem:[%s3 + $0x8] sm:$0xff]
    %v100 = vld [vmem:[%s3 + $0x10] sm:$0xff]
    %v101 = vld [vmem:[%s3 + $0x18] sm:$0xff]
    %v102 = vld [vmem:[%s3 + $0x20] sm:$0xff]
    %v103 = vld [vmem:[%s3 + $0x28] sm:$0xff]
    %v104 = vld [vmem:[%s3 + $0x30] sm:$0xff]
    %v105 = vld [vmem:[%s3 + $0x38] sm:$0xff]
    %v106 = vld [vmem:[%s3 + $0x40] sm:$0xff]
    %v107 = vld [vmem:[%s3 + $0x48] sm:$0xff]
    %v108 = vld [vmem:[%s3 + $0x50] sm:$0xff]
    %v109 = vld [vmem:[%s3 + $0x58] sm:$0xff]
    %v110 = vld [vmem:[%s3 + $0x60] sm:$0xff]
    %v111 = vld [vmem:[%s3 + $0x68] sm:$0xff]
    %v112 = vld [vmem:[%s3 + $0x70] sm:$0xff]
    %v113 = vld [vmem:[%s3 + $0x78] sm:$0xff]
    %v114 = vld [vmem:[%s4] sm:$0x3]
    %v116 = vlaneseq
    %v117 = vshrl.u32 %v116, 7
    %v118 = vsub.s32 0, %v117
    %v119 = vrot.slane %v114, %v118
    %v120 = vlaneseq
    %v121 = vshrl.u32 %v120, 7
    %v122 = vsub.s32 1, %v121
    %v123 = vrot.slane %v114, %v122
    %v142 = vunpack.c.l.b16 %v98
    %v143 = vunpack.c.h.b16 %v98
    %v144 = vunpack.c.l.b16 %v99
    %v145 = vunpack.c.h.b16 %v99
    %v146 = vunpack.c.l.b16 %v100
    %v147 = vunpack.c.h.b16 %v100
    %v148 = vunpack.c.l.b16 %v101
    %v149 = vunpack.c.h.b16 %v101
    %v150 = vunpack.c.l.b16 %v102
    %v151 = vunpack.c.h.b16 %v102
    %v152 = vunpack.c.l.b16 %v103
    %v153 = vunpack.c.h.b16 %v103
    %v154 = vunpack.c.l.b16 %v104
    %v155 = vunpack.c.h.b16 %v104
    %v156 = vunpack.c.l.b16 %v105
    %v157 = vunpack.c.h.b16 %v105
    %v158 = vunpack.c.l.b16 %v106
    %v159 = vunpack.c.h.b16 %v106
    %v160 = vunpack.c.l.b16 %v107
    %v161 = vunpack.c.h.b16 %v107
    %v162 = vunpack.c.l.b16 %v108
    %v163 = vunpack.c.h.b16 %v108
    %v164 = vunpack.c.l.b16 %v109
    %v165 = vunpack.c.h.b16 %v109
    %v166 = vunpack.c.l.b16 %v110
    %v167 = vunpack.c.h.b16 %v110
    %v168 = vunpack.c.l.b16 %v111
    %v169 = vunpack.c.h.b16 %v111
    %v170 = vunpack.c.l.b16 %v112
    %v171 = vunpack.c.h.b16 %v112
    %v172 = vunpack.c.l.b16 %v113
    %v173 = vunpack.c.h.b16 %v113
    %v174 = vpack.c.b16 %v144, %v142
    %v175 = vpack.c.b16 %v145, %v143
    %v176 = vpack.c.b16 %v148, %v146
    %v177 = vpack.c.b16 %v149, %v147
    %v178 = vpack.c.b16 %v152, %v150
    %v179 = vpack.c.b16 %v153, %v151
    %v180 = vpack.c.b16 %v156, %v154
    %v181 = vpack.c.b16 %v157, %v155
    %v182 = vpack.c.b16 %v160, %v158
    %v183 = vpack.c.b16 %v161, %v159
    %v184 = vpack.c.b16 %v164, %v162
    %v185 = vpack.c.b16 %v165, %v163
    %v186 = vpack.c.b16 %v168, %v166
    %v187 = vpack.c.b16 %v169, %v167
    %v188 = vpack.c.b16 %v172, %v170
    %v189 = vpack.c.b16 %v173, %v171
    %206 = vmatprep.subr.bf16.mxu0 %v175
    %207 = vmatpush1.bf16.msra.mxu0 %v174
    %208 = vmatprep.subr.bf16.mxu0 %v177
    %209 = vmatpush1.bf16.msra.mxu0 %v176
    %210 = vmatprep.subr.bf16.mxu0 %v179
    %211 = vmatpush1.bf16.msra.mxu0 %v178
    %212 = vmatprep.subr.bf16.mxu0 %v181
    %213 = vmatpush1.bf16.msra.mxu0 %v180
    %214 = vmatprep.subr.bf16.mxu0 %v183
    %215 = vmatpush1.bf16.msra.mxu0 %v182
    %216 = vmatprep.subr.bf16.mxu0 %v185
    %217 = vmatpush1.bf16.msra.mxu0 %v184
    %218 = vmatprep.subr.bf16.mxu0 %v187
    %219 = vmatpush1.bf16.msra.mxu0 %v186
    %220 = vmatprep.subr.bf16.mxu0 %v189
    %221 = vmatpush1.bf16.msra.mxu0 %v188
    %222 = vmatprep.subr.bf16.mxu0 0
    %223 = vmatpush1.bf16.msra.mxu0 0
    %224 = vmatprep.subr.bf16.mxu0 0
    %225 = vmatpush1.bf16.msra.mxu0 0
    %226 = vmatprep.subr.bf16.mxu0 0
    %227 = vmatpush1.bf16.msra.mxu0 0
    %228 = vmatprep.subr.bf16.mxu0 0
    %229 = vmatpush1.bf16.msra.mxu0 0
    %230 = vmatprep.subr.bf16.mxu0 0
    %231 = vmatpush1.bf16.msra.mxu0 0
    %232 = vmatprep.subr.bf16.mxu0 0
    %233 = vmatpush1.bf16.msra.mxu0 0
    %234 = vmatprep.subr.bf16.mxu0 0
    %235 = vmatpush1.bf16.msra.mxu0 0
    %236 = vmatprep.subr.bf16.mxu0 0
    %237 = vmatpush1.bf16.msra.mxu0 0
    %238 = vmatprep.mubr.bf16.mxu0 0
    %239 = vmatmul.mubr.bf16.gmra.mrb[0].mxu0 %v96
    %v240 = vpop.f32.mrb[0].mxu0
    %v241 = vadd.f32 %v119, %v240
    %v242 = vpop.f32.mrb[0].mxu0
    %v243 = vadd.f32 %v123, %v242
    %v244 = vpop.f32.mrb[0].mxu0
    %v245 = vadd.f32 %v119, %v244
    %v246 = vpop.f32.mrb[0].mxu0
    %v247 = vadd.f32 %v123, %v246
    %248 = vmatprep.mubr.bf16.mxu0 0
    %249 = vmatmul.mubr.bf16.gmra.mrb[0].mxu0 %v97
    %v250 = vpop.f32.mrb[0].mxu0
    %v251 = vadd.f32 %v119, %v250
    %v252 = vpop.f32.mrb[0].mxu0
    %v253 = vadd.f32 %v123, %v252
    %v254 = vpop.f32.mrb[0].mxu0
    %v255 = vadd.f32 %v119, %v254
    %v256 = vpop.f32.mrb[0].mxu0
    %v257 = vadd.f32 %v123, %v256
    %258 = vdwg.mxu0
    %259 = vst [vmem:[#allocation2] sm:$0xff] %v241
    %260 = vst [vmem:[#allocation2 + $0x8] sm:$0xff] %v243
    %261 = vst [vmem:[#allocation2 + $0x10] sm:$0xff] %v245
    %262 = vst [vmem:[#allocation2 + $0x18] sm:$0xff] %v247
    %263 = vst [vmem:[#allocation2 + $0x20] sm:$0xff] %v251
    %264 = vst [vmem:[#allocation2 + $0x28] sm:$0xff] %v253
    %265 = vst [vmem:[#allocation2 + $0x30] sm:$0xff] %v255
    %266 = vst [vmem:[#allocation2 + $0x38] sm:$0xff] %v257
    // Predicated region
    $region22: #{base_transformer_decoder_forward.1} parent=1 // pred_check
      _
    $region23: #{base_transformer_decoder_forward.1} parent=1 // pred_check_branch
      %268 = sbr.rel (0) target = $region25
    $region24: #{base_transformer_decoder_forward.1} parent=1 // pred_region
      %s270 = ssub.s32 1024, 1024
      %271 = vsyncadd [#allocation3], %s270
      %s272 = sshll.u32 [#allocation2], 4
      %s273 = int_to_ptr.vmem [resolvable:$true] %s272
      %278 = dma.vmem_to_hbm [thread:$0]  %s273, 1024, %s5, [#allocation3], 256, 256, 16
    $region25: #{base_transformer_decoder_forward.1} parent=1 // pred_fallthru
      _
    // Predicated region
    $region26: #{base_transformer_decoder_forward.1} parent=1 // pred_check
      _
    $region27: #{base_transformer_decoder_forward.1} parent=1 // pred_check_branch
      %280 = sbr.rel (0) target = $region29
    $region28: #{base_transformer_decoder_forward.1} parent=1 // pred_region
      %281 = dma.done [#allocation3], 1024
    $region29: #{base_transformer_decoder_forward.1} parent=1 // pred_fallthru
      _
    %282 = vsyncpa [#allocation3], 1

</llo_original>
